<compile_context>
chip_gen: v7x
topology: tpu7x:2x2x1
jax: 0.10.0
libtpu: 0.0.40
codegen_flags: <defaults>
</compile_context>

<pallas_src>
import functools
import math

import jax
import jax.numpy as jnp
from jax import lax
from jax.experimental import pallas as pl
from jax.experimental.pallas import tpu as pltpu

# ---- small, module-consistent config ----
NUM_CLASSES = 3        # len(classnames)
NUM_IMG_TOKENS = 8     # image feature tokens
INPUT_DIM = 32         # text_encoder.output_dim
HIDDEN = 32            # cfg.PROMPT.DECODER_HIDDEN
OUTPUT_DIM = 32        # text_encoder.ln_final.weight.shape[0]
MAX_LENGTH = 4         # cfg.PROMPT.DECODER_MAX_LENGTH
MAX_CONTEXT = 16       # cfg.LANG.CONTEXT_LENGTH
SUFFIX_LEN = MAX_CONTEXT - 1 - MAX_LENGTH

LANE = 128             # TPU lane-tile width
SUBLANE = 8            # TPU sublane-tile height (f32)


def _dual_decoder_kernel(cls_ref, img_ref, wq_ref, wkv_ref, w1_ref, b1_ref,
                         w2_ref, b2_ref, out_ref, *, lane_pad, ld):
    """Both decoders (0=pos, 1=neg) fused along the lane axis; single invocation.

    cls_ref : (cls_pad, Din)    bf16  class features, zero-padded to a sublane multiple
    img_ref : (N, Din)          bf16  image tokens (shared across classes)
    wq_ref  : (Din, 2*P)        bf16  [Wq_pos*scale | Wq_neg*scale], each padded to P lanes
    wkv_ref : (Din, 4*P)        bf16  [Wk_pos | Wk_neg | Wv_pos | Wv_neg], each padded to P lanes
    w1_ref  : (2*P, 2*H)        bf16  block-diagonal MLP layer-1
    b1_ref  : (1, 2*H)          f32   [b1_pos | b1_neg]
    w2_ref  : (2*H, 2*LD)       bf16  block-diagonal MLP layer-2
    b2_ref  : (1, 2*LD)         f32   [b2_pos | b2_neg]
    out_ref : (2, cls_pad, LD)  f32
    """
    P = lane_pad

    # Q only from class rows, K/V only from image rows; one matmul each covers BOTH
    # decoders.  bf16 operands, f32 accumulation.
    q = jnp.dot(cls_ref[...], wq_ref[...], preferred_element_type=jnp.float32)    # (cls_pad, 2P)
    kv = jnp.dot(img_ref[...], wkv_ref[...], preferred_element_type=jnp.float32)  # (N, 4P)

    def attend(q_d, k_d, v_d):
        # scores = (q / sqrt(Dh)) @ k.T ; the scale is pre-folded into Wq on the host.
        s = lax.dot_general(q_d, k_d, (((1,), (1,)), ((), ())),
                            preferred_element_type=jnp.float32)                   # (cls_pad, N)
        m = jnp.max(s, axis=-1, keepdims=True)
        e = jnp.exp(s - m)                                                         # f32 softmax math
        denom = jnp.sum(e, axis=-1, keepdims=True)
        # normalization deferred; approximate EUP reciprocal (documented divergence).
        return jnp.dot(e, v_d, preferred_element_type=jnp.float32) \
            * pl.reciprocal(denom, approx=True)                                    # (cls_pad, P)

    # all lane slices below fall on 128-lane tile boundaries -> zero-cost views
    ctx_pos = attend(q[:, :P], kv[:, 0:P], kv[:, 2 * P:3 * P])
    ctx_neg = attend(q[:, P:], kv[:, P:2 * P], kv[:, 3 * P:4 * P])
    ctx = jnp.concatenate([ctx_pos, ctx_neg], axis=-1).astype(jnp.bfloat16)        # (cls_pad, 2P)

    # block-diagonal 2-layer MLP: one matmul per layer serves both decoders
    h = jnp.maximum(
        jnp.dot(ctx, w1_ref[...], preferred_element_type=jnp.float32) + b1_ref[...],
        0.0)                                                                        # (cls_pad, 2H)
    y = jnp.dot(h.astype(jnp.bfloat16), w2_ref[...],
                preferred_element_type=jnp.float32) + b2_ref[...]                   # (cls_pad, 2LD)

    # unmasked, lane-dense full-tile stores; padded class rows dropped in the wrapper
    out_ref[0] = y[:, :ld]
    out_ref[1] = y[:, ld:]


def precompute_fused(cls_feature, params):
    """One-time host-side fusion of all FROZEN tensors (hoisted out of the per-call path)."""
    wq, wk, wv, w1, b1, w2, b2 = params
    C, din = cls_feature.shape
    dh = wq.shape[-1]
    hid = w1.shape[-1]
    ld = w2.shape[-1]
    cls_pad = ((C + SUBLANE - 1) // SUBLANE) * SUBLANE
    lane_pad = ((dh + LANE - 1) // LANE) * LANE
    scale = 1.0 / math.sqrt(dh)

    def pad_lanes(w):  # (Din, Dh) -> (Din, lane_pad), zero-padded to a full lane tile
        return jnp.pad(w, ((0, 0), (0, lane_pad - w.shape[-1])))

    # fused Q projection (attention scale folded in), each decoder block padded to P lanes
    wq_blk = jnp.concatenate([pad_lanes(wq[0] * scale), pad_lanes(wq[1] * scale)], axis=-1)
    # fused K|V projection applied to image rows only
    wkv_blk = jnp.concatenate([pad_lanes(wk[0]), pad_lanes(wk[1]),
                               pad_lanes(wv[0]), pad_lanes(wv[1])], axis=-1)

    # block-diagonal MLP weights: ctx_pos drives cols [0:H]/[0:LD], ctx_neg drives [H:2H]/[LD:2LD]
    w1_blk = jnp.zeros((2 * lane_pad, 2 * hid), jnp.float32)
    w1_blk = w1_blk.at[0:dh, 0:hid].set(w1[0])
    w1_blk = w1_blk.at[lane_pad:lane_pad + dh, hid:2 * hid].set(w1[1])
    w2_blk = jnp.zeros((2 * hid, 2 * ld), jnp.float32)
    w2_blk = w2_blk.at[0:hid, 0:ld].set(w2[0])
    w2_blk = w2_blk.at[hid:2 * hid, ld:2 * ld].set(w2[1])

    b1_both = jnp.concatenate([b1[0], b1[1]], axis=-1)     # (1, 2H)  stays f32
    b2_both = jnp.concatenate([b2[0], b2[1]], axis=-1)     # (1, 2LD) stays f32

    cls_padded = jnp.pad(cls_feature, ((0, cls_pad - C), (0, 0)))

    return {
        "cls": cls_padded.astype(jnp.bfloat16),   # bf16 matmul operands (f32 accumulate in-kernel)
        "wq": wq_blk.astype(jnp.bfloat16),
        "wkv": wkv_blk.astype(jnp.bfloat16),
        "w1": w1_blk.astype(jnp.bfloat16),
        "b1": b1_both.astype(jnp.float32),
        "w2": w2_blk.astype(jnp.bfloat16),
        "b2": b2_both.astype(jnp.float32),
        "dims": dict(num_cls=C, cls_pad=cls_pad, lane_pad=lane_pad,
                     din=din, dh=dh, hidden=hid, ld=ld),
    }


def run_decoders(fused, image_features):
    """Runs pos & neg decoders in ONE kernel call; returns (2, C, L*D_out)."""
    d = fused["dims"]
    C, cls_pad, P = d["num_cls"], d["cls_pad"], d["lane_pad"]
    din, hid, ld = d["din"], d["hidden"], d["ld"]
    n = image_features.shape[0]

    # advisory cost hint so XLA schedules this tiny custom call tightly
    flops = 2 * (cls_pad * din * 2 * P + n * din * 4 * P
                 + 2 * cls_pad * P * n + 2 * cls_pad * n * P
                 + cls_pad * 2 * P * 2 * hid + cls_pad * 2 * hid * 2 * ld)
    bytes_accessed = (2 * (cls_pad * din + n * din + din * 6 * P
                           + 2 * P * 2 * hid + 2 * hid * 2 * ld)
                      + 4 * (2 * hid + 2 * ld + 2 * cls_pad * ld))
    cost = pl.CostEstimate(flops=int(flops),
                           transcendentals=int(2 * cls_pad * (n + 1)),
                           bytes_accessed=int(bytes_accessed))

    kernel = functools.partial(_dual_decoder_kernel, lane_pad=P, ld=ld)
    out = pl.pallas_call(
        kernel,
        out_shape=jax.ShapeDtypeStruct((2, cls_pad, ld), jnp.float32),
        # single invocation, fully VMEM-resident (<0.1 MiB): no grid / tiling on purpose
        in_specs=[pl.BlockSpec(memory_space=pltpu.MemorySpace.VMEM) for _ in range(8)],
        out_specs=pl.BlockSpec(memory_space=pltpu.MemorySpace.VMEM),
        cost_estimate=cost,
    )(fused["cls"], image_features.astype(jnp.bfloat16),
      fused["wq"], fused["wkv"], fused["w1"], fused["b1"], fused["w2"], fused["b2"])
    return out[:, :C, :]   # drop padded class rows (kernel writes full unmasked tiles)


def make_synthetic_tokens(num_classes):
    # TODO(synk): preprocess_text / tokenizer has no Pallas equivalent; deterministic stand-in.
    sot, x_id, eot, pad = 49406, 343, 49407, 0
    ids = jnp.full((num_classes, MAX_CONTEXT), pad, dtype=jnp.int32)
    ids = ids.at[:, 0].set(sot)
    ids = ids.at[:, 1:1 + MAX_LENGTH].set(x_id)
    ids = ids.at[:, 1 + MAX_LENGTH].set(eot)
    mask = (ids != pad).astype(jnp.int32)
    return {"input_ids": ids, "attention_mask": mask}


def pspg_lp_forward(image_features, buffers, fused):
    """Mirrors PsPG_LP.forward for ENABLE_PREFIX=False, eval mode (no pair loss)."""
    prefix_embed = buffers["prefix_embed"]        # (C, 1, D_out)
    suffix_embed = buffers["suffix_embed"]        # (C, SUFFIX_LEN, D_out)
    C = buffers["cls_feature"].shape[0]

    # torch: image_features.unsqueeze(0).repeat(C, 1, 1) -- identical per class, shared in-kernel.
    out_flat = run_decoders(fused, image_features)                          # (2, C, L*D_out)
    out = out_flat.reshape(2, C, MAX_LENGTH, OUTPUT_DIM)
    output_pos, output_neg = out[0], out[1]                                 # (C, L, D_out) each

    tokenized_pos = make_synthetic_tokens(C)
    tokenized_neg = make_synthetic_tokens(C)

    prompts_pos = jnp.concatenate([prefix_embed, output_pos, suffix_embed], axis=1)
    prompts_neg = jnp.concatenate([prefix_embed, output_neg, suffix_embed], axis=1)

    tokenized_pairs = None   # training-only PAIRLOSS branch
    prompt_pairs = None
    return tokenized_pos, tokenized_neg, prompts_pos, prompts_neg, tokenized_pairs, prompt_pairs


if __name__ == "__main__":
    key = jax.random.PRNGKey(0)
    keys = jax.random.split(key, 12)

    # frozen text-encoder buffers (synthesized deterministically)
    buffers = {
        "cls_feature": jax.random.normal(keys[0], (NUM_CLASSES, INPUT_DIM), jnp.float32),
        "prefix_embed": jax.random.normal(keys[1], (NUM_CLASSES, 1, OUTPUT_DIM), jnp.float32),
        "suffix_embed": jax.random.normal(keys[2], (NUM_CLASSES, SUFFIX_LEN, OUTPUT_DIM), jnp.float32),
    }

    # decoder params, stacked on axis 0: [pos, neg]
    def w(k, shape, scale=0.05):
        return scale * jax.random.normal(k, shape, jnp.float32)

    LD = MAX_LENGTH * OUTPUT_DIM
    params = (
        w(keys[3], (2, INPUT_DIM, HIDDEN)),    # Wq
        w(keys[4], (2, INPUT_DIM, HIDDEN)),    # Wk
        w(keys[5], (2, INPUT_DIM, HIDDEN)),    # Wv
        w(keys[6], (2, HIDDEN, HIDDEN)),       # W1
        w(keys[7], (2, 1, HIDDEN)),            # b1
        w(keys[8], (2, HIDDEN, LD)),           # W2
        w(keys[9], (2, 1, LD)),                # b2
    )

    image_features = jax.random.normal(keys[10], (NUM_IMG_TOKENS, INPUT_DIM), jnp.float32)

    # one-time init-path fusion of all frozen tensors (hoisted out of the forward path)
    fused = precompute_fused(buffers["cls_feature"], params)
    fused = jax.tree_util.tree_map(
        lambda x: jax.block_until_ready(x) if isinstance(x, jax.Array) else x, fused)

    outs = pspg_lp_forward(image_features, buffers, fused)
    tok_pos, tok_neg, prompts_pos, prompts_neg, tok_pairs, prompt_pairs = outs
    jax.block_until_ready(prompts_pos)
    jax.block_until_ready(prompts_neg)

    assert prompts_pos.shape == (NUM_CLASSES, MAX_CONTEXT, OUTPUT_DIM)
    assert prompts_neg.shape == (NUM_CLASSES, MAX_CONTEXT, OUTPUT_DIM)
    assert tok_pos["input_ids"].shape == (NUM_CLASSES, MAX_CONTEXT)
    assert bool(jnp.all(jnp.isfinite(prompts_pos))) and bool(jnp.all(jnp.isfinite(prompts_neg)))
    print("KERNEL_OK")
</pallas_src>

<mosaic_0001>
module attributes {stable_mosaic.version = 11 : i64} {
  func.func @_dual_decoder_kernel(%arg0: memref<8x32xbf16, #tpu.memory_space<vmem>>, %arg1: memref<8x32xbf16, #tpu.memory_space<vmem>>, %arg2: memref<32x256xbf16, #tpu.memory_space<vmem>>, %arg3: memref<32x512xbf16, #tpu.memory_space<vmem>>, %arg4: memref<256x64xbf16, #tpu.memory_space<vmem>>, %arg5: memref<1x64xf32, #tpu.memory_space<vmem>>, %arg6: memref<64x256xbf16, #tpu.memory_space<vmem>>, %arg7: memref<1x256xf32, #tpu.memory_space<vmem>>, %arg8: memref<2x8x128xf32, #tpu.memory_space<vmem>>) attributes {dimension_semantics = [], scalar_prefetch = 0 : i64, scratch_operands = 0 : i64, tpu.core_type = #tpu.core_type<tc>} {
    %c0 = arith.constant 0 : index
    %c0_0 = arith.constant 0 : index
    %0 = vector.load %arg0[%c0, %c0_0] : memref<8x32xbf16, #tpu.memory_space<vmem>>, vector<8x32xbf16>
    %c0_1 = arith.constant 0 : index
    %c0_2 = arith.constant 0 : index
    %1 = vector.load %arg2[%c0_1, %c0_2] : memref<32x256xbf16, #tpu.memory_space<vmem>>, vector<32x256xbf16>
    %cst = arith.constant dense<0.000000e+00> : vector<8x256xf32>
    %2 = tpu.matmul %0, %1, %cst {dimension_numbers = #tpu.dot_dimension_numbers<[1], [0], [0], [1], [0, 0, 1, 1], [], []>} : vector<8x32xbf16>, vector<32x256xbf16>, vector<8x256xf32> -> vector<8x256xf32>
    %c0_3 = arith.constant 0 : index
    %c0_4 = arith.constant 0 : index
    %3 = vector.load %arg1[%c0_3, %c0_4] : memref<8x32xbf16, #tpu.memory_space<vmem>>, vector<8x32xbf16>
    %c0_5 = arith.constant 0 : index
    %c0_6 = arith.constant 0 : index
    %4 = vector.load %arg3[%c0_5, %c0_6] : memref<32x512xbf16, #tpu.memory_space<vmem>>, vector<32x512xbf16>
    %cst_7 = arith.constant dense<0.000000e+00> : vector<8x512xf32>
    %5 = tpu.matmul %3, %4, %cst_7 {dimension_numbers = #tpu.dot_dimension_numbers<[1], [0], [0], [1], [0, 0, 1, 1], [], []>} : vector<8x32xbf16>, vector<32x512xbf16>, vector<8x512xf32> -> vector<8x512xf32>
    %6 = vector.extract_strided_slice %2 {offsets = [0, 0], sizes = [8, 128], strides = [1, 1]} : vector<8x256xf32> to vector<8x128xf32>
    %7 = vector.extract_strided_slice %5 {offsets = [0, 0], sizes = [8, 128], strides = [1, 1]} : vector<8x512xf32> to vector<8x128xf32>
    %8 = vector.extract_strided_slice %5 {offsets = [0, 256], sizes = [8, 128], strides = [1, 1]} : vector<8x512xf32> to vector<8x128xf32>
    %cst_8 = arith.constant dense<0.000000e+00> : vector<8x8xf32>
    %9 = tpu.matmul %6, %7, %cst_8 {dimension_numbers = #tpu.dot_dimension_numbers<[1], [1], [0], [0], [0, 0, 1, 0], [], []>} : vector<8x128xf32>, vector<8x128xf32>, vector<8x8xf32> -> vector<8x8xf32>
    %cst_9 = arith.constant dense<0xFF800000> : vector<8xf32>
    %10 = vector.multi_reduction <maximumf>, %9, %cst_9 [1] : vector<8x8xf32> to vector<8xf32>
    %11 = vector.shape_cast %10 : vector<8xf32> to vector<8x1xf32>
    %12 = vector.broadcast %11 : vector<8x1xf32> to vector<8x8xf32>
    %13 = arith.subf %9, %12 : vector<8x8xf32>
    %14 = math.exp %13 : vector<8x8xf32>
    %cst_10 = arith.constant dense<0.000000e+00> : vector<8xf32>
    %15 = vector.multi_reduction <add>, %14, %cst_10 [1] : vector<8x8xf32> to vector<8xf32>
    %16 = vector.shape_cast %15 : vector<8xf32> to vector<8x1xf32>
    %cst_11 = arith.constant dense<0.000000e+00> : vector<8x128xf32>
    %17 = tpu.matmul %14, %8, %cst_11 {dimension_numbers = #tpu.dot_dimension_numbers<[1], [0], [0], [1], [0, 0, 1, 1], [], []>} : vector<8x8xf32>, vector<8x128xf32>, vector<8x128xf32> -> vector<8x128xf32>
    %18 = tpu.reciprocal %16 {approx = true} : vector<8x1xf32> -> vector<8x1xf32>
    %19 = vector.broadcast %18 : vector<8x1xf32> to vector<8x128xf32>
    %20 = arith.mulf %17, %19 : vector<8x128xf32>
    %21 = vector.extract_strided_slice %2 {offsets = [0, 128], sizes = [8, 128], strides = [1, 1]} : vector<8x256xf32> to vector<8x128xf32>
    %22 = vector.extract_strided_slice %5 {offsets = [0, 128], sizes = [8, 128], strides = [1, 1]} : vector<8x512xf32> to vector<8x128xf32>
    %23 = vector.extract_strided_slice %5 {offsets = [0, 384], sizes = [8, 128], strides = [1, 1]} : vector<8x512xf32> to vector<8x128xf32>
    %cst_12 = arith.constant dense<0.000000e+00> : vector<8x8xf32>
    %24 = tpu.matmul %21, %22, %cst_12 {dimension_numbers = #tpu.dot_dimension_numbers<[1], [1], [0], [0], [0, 0, 1, 0], [], []>} : vector<8x128xf32>, vector<8x128xf32>, vector<8x8xf32> -> vector<8x8xf32>
    %cst_13 = arith.constant dense<0xFF800000> : vector<8xf32>
    %25 = vector.multi_reduction <maximumf>, %24, %cst_13 [1] : vector<8x8xf32> to vector<8xf32>
    %26 = vector.shape_cast %25 : vector<8xf32> to vector<8x1xf32>
    %27 = vector.broadcast %26 : vector<8x1xf32> to vector<8x8xf32>
    %28 = arith.subf %24, %27 : vector<8x8xf32>
    %29 = math.exp %28 : vector<8x8xf32>
    %cst_14 = arith.constant dense<0.000000e+00> : vector<8xf32>
    %30 = vector.multi_reduction <add>, %29, %cst_14 [1] : vector<8x8xf32> to vector<8xf32>
    %31 = vector.shape_cast %30 : vector<8xf32> to vector<8x1xf32>
    %cst_15 = arith.constant dense<0.000000e+00> : vector<8x128xf32>
    %32 = tpu.matmul %29, %23, %cst_15 {dimension_numbers = #tpu.dot_dimension_numbers<[1], [0], [0], [1], [0, 0, 1, 1], [], []>} : vector<8x8xf32>, vector<8x128xf32>, vector<8x128xf32> -> vector<8x128xf32>
    %33 = tpu.reciprocal %31 {approx = true} : vector<8x1xf32> -> vector<8x1xf32>
    %34 = vector.broadcast %33 : vector<8x1xf32> to vector<8x128xf32>
    %35 = arith.mulf %32, %34 : vector<8x128xf32>
    %36 = tpu.concatenate %20, %35 in 1 : vector<8x128xf32>, vector<8x128xf32> -> vector<8x256xf32>
    %37 = arith.truncf %36 : vector<8x256xf32> to vector<8x256xbf16>
    %c0_16 = arith.constant 0 : index
    %c0_17 = arith.constant 0 : index
    %38 = vector.load %arg4[%c0_16, %c0_17] : memref<256x64xbf16, #tpu.memory_space<vmem>>, vector<256x64xbf16>
    %cst_18 = arith.constant dense<0.000000e+00> : vector<8x64xf32>
    %39 = tpu.matmul %37, %38, %cst_18 {dimension_numbers = #tpu.dot_dimension_numbers<[1], [0], [0], [1], [0, 0, 1, 1], [], []>} : vector<8x256xbf16>, vector<256x64xbf16>, vector<8x64xf32> -> vector<8x64xf32>
    %c0_19 = arith.constant 0 : index
    %c0_20 = arith.constant 0 : index
    %40 = vector.load %arg5[%c0_19, %c0_20] : memref<1x64xf32, #tpu.memory_space<vmem>>, vector<1x64xf32>
    %41 = vector.broadcast %40 : vector<1x64xf32> to vector<8x64xf32>
    %42 = arith.addf %39, %41 : vector<8x64xf32>
    %cst_21 = arith.constant 0.000000e+00 : f32
    %43 = vector.broadcast %cst_21 : f32 to vector<8x64xf32>
    %44 = arith.maximumf %42, %43 : vector<8x64xf32>
    %45 = arith.truncf %44 : vector<8x64xf32> to vector<8x64xbf16>
    %c0_22 = arith.constant 0 : index
    %c0_23 = arith.constant 0 : index
    %46 = vector.load %arg6[%c0_22, %c0_23] : memref<64x256xbf16, #tpu.memory_space<vmem>>, vector<64x256xbf16>
    %cst_24 = arith.constant dense<0.000000e+00> : vector<8x256xf32>
    %47 = tpu.matmul %45, %46, %cst_24 {dimension_numbers = #tpu.dot_dimension_numbers<[1], [0], [0], [1], [0, 0, 1, 1], [], []>} : vector<8x64xbf16>, vector<64x256xbf16>, vector<8x256xf32> -> vector<8x256xf32>
    %c0_25 = arith.constant 0 : index
    %c0_26 = arith.constant 0 : index
    %48 = vector.load %arg7[%c0_25, %c0_26] : memref<1x256xf32, #tpu.memory_space<vmem>>, vector<1x256xf32>
    %49 = vector.broadcast %48 : vector<1x256xf32> to vector<8x256xf32>
    %50 = arith.addf %47, %49 : vector<8x256xf32>
    %51 = vector.extract_strided_slice %50 {offsets = [0, 0], sizes = [8, 128], strides = [1, 1]} : vector<8x256xf32> to vector<8x128xf32>
    %c0_27 = arith.constant 0 : index
    %c0_28 = arith.constant 0 : index
    %c0_29 = arith.constant 0 : index
    %52 = vector.load %arg8[%c0_27, %c0_28, %c0_29] : memref<2x8x128xf32, #tpu.memory_space<vmem>>, vector<1x8x128xf32>
    %53 = vector.shape_cast %52 : vector<1x8x128xf32> to vector<8x128xf32>
    %54 = vector.shape_cast %51 : vector<8x128xf32> to vector<1x8x128xf32>
    tpu.vector_store %arg8[%c0_27, %c0_28, %c0_29], %54 {strides = array<i32>} : memref<2x8x128xf32, #tpu.memory_space<vmem>>, vector<1x8x128xf32>,
    %55 = vector.extract_strided_slice %50 {offsets = [0, 128], sizes = [8, 128], strides = [1, 1]} : vector<8x256xf32> to vector<8x128xf32>
    %c1 = arith.constant 1 : index
    %c0_30 = arith.constant 0 : index
    %c0_31 = arith.constant 0 : index
    %56 = vector.load %arg8[%c1, %c0_30, %c0_31] : memref<2x8x128xf32, #tpu.memory_space<vmem>>, vector<1x8x128xf32>
    %57 = vector.shape_cast %56 : vector<1x8x128xf32> to vector<8x128xf32>
    %58 = vector.shape_cast %55 : vector<8x128xf32> to vector<1x8x128xf32>
    tpu.vector_store %arg8[%c1, %c0_30, %c0_31], %58 {strides = array<i32>} : memref<2x8x128xf32, #tpu.memory_space<vmem>>, vector<1x8x128xf32>,
    return
  }
}

</mosaic_0001>

<llo_original>
// kernel: tpu_custom_call.1
$region0: #{tpu_custom_call.1}
  #allocation0 [shape = 'u32[]', space=smem, size = 0x4, offset = 0x4, fixed_abs, tag = 'smem constant byte address 0x4 - core index']
  #allocation1 [shape = 'u32[144,128]{1,0:T(1,128)}', space=vmem, size = 0x12000, scoped, tag = 'internal scratch']
  %s0 = inlined_call_operand.vmem [shape: bf16[8,32], index: 0, kind: input, shape index: {}]
  %s1 = inlined_call_operand.vmem [shape: bf16[8,32], index: 1, kind: input, shape index: {}]
  %s2 = inlined_call_operand.vmem [shape: bf16[32,256], index: 2, kind: input, shape index: {}]
  %s3 = inlined_call_operand.vmem [shape: bf16[32,512], index: 3, kind: input, shape index: {}]
  %s4 = inlined_call_operand.vmem [shape: bf16[256,64], index: 4, kind: input, shape index: {}]
  %s5 = inlined_call_operand.vmem [shape: f32[1,64], index: 5, kind: input, shape index: {}]
  %s6 = inlined_call_operand.vmem [shape: bf16[64,256], index: 6, kind: input, shape index: {}]
  %s7 = inlined_call_operand.vmem [shape: f32[1,256], index: 7, kind: input, shape index: {}]
  %s8 = inlined_call_operand.hbm [shape: f32[2,8,128], index: 8, kind: output, shape index: {}]
  %s9 = sld [smem:[#allocation0]]
  $region42: #{tpu_custom_call.1} parent=0
    _
  %s11 = ssub.s32 1, %s9
  %s12 = scalar_select 0, %s11, %s9
  $region1: #{tpu_custom_call.1} parent=0
    #allocation2 [shape = 'u8[8192]{0}', space=vmem, size = 0x2000, scoped, tag = 'output window, operand 0, single buffered']
    #allocation3 [shape = 's32[1]{0}', space=sflag, size = 0x4, scoped, tag = 'scoped memory for tpu_custom_call.1']
    %13 = vsyncpa [#allocation3], 0
    // Predicated region
    $region2: #{tpu_custom_call.1} parent=1 // pred_check
      _
    $region3: #{tpu_custom_call.1} parent=1 // pred_check_branch
      %15 = sbr.rel (0) target = $region5
    $region4: #{tpu_custom_call.1} parent=1 // pred_region
      _
    $region5: #{tpu_custom_call.1} parent=1 // pred_fallthru
      _
    // Predicated region
    $region6: #{tpu_custom_call.1} parent=1 // pred_check
      _
    $region7: #{tpu_custom_call.1} parent=1 // pred_check_branch
      %17 = sbr.rel (0) target = $region9
    $region8: #{tpu_custom_call.1} parent=1 // pred_region
      _
    $region9: #{tpu_custom_call.1} parent=1 // pred_fallthru
      _
    // Predicated region
    $region10: #{tpu_custom_call.1} parent=1 // pred_check
      _
    $region11: #{tpu_custom_call.1} parent=1 // pred_check_branch
      %19 = sbr.rel (0) target = $region13
    $region12: #{tpu_custom_call.1} parent=1 // pred_region
      _
    $region13: #{tpu_custom_call.1} parent=1 // pred_fallthru
      _
    // Predicated region
    $region14: #{tpu_custom_call.1} parent=1 // pred_check
      _
    $region15: #{tpu_custom_call.1} parent=1 // pred_check_branch
      %21 = sbr.rel (0) target = $region17
    $region16: #{tpu_custom_call.1} parent=1 // pred_region
      _
    $region17: #{tpu_custom_call.1} parent=1 // pred_fallthru
      _
    // Predicated region
    $region18: #{tpu_custom_call.1} parent=1 // pred_check
      _
    $region19: #{tpu_custom_call.1} parent=1 // pred_check_branch
      %23 = sbr.rel (0) target = $region21
    $region20: #{tpu_custom_call.1} parent=1 // pred_region
      _
    $region21: #{tpu_custom_call.1} parent=1 // pred_fallthru
      _
    // Predicated region
    $region22: #{tpu_custom_call.1} parent=1 // pred_check
      _
    $region23: #{tpu_custom_call.1} parent=1 // pred_check_branch
      %25 = sbr.rel (0) target = $region25
    $region24: #{tpu_custom_call.1} parent=1 // pred_region
      _
    $region25: #{tpu_custom_call.1} parent=1 // pred_fallthru
      _
    // Predicated region
    $region26: #{tpu_custom_call.1} parent=1 // pred_check
      _
    $region27: #{tpu_custom_call.1} parent=1 // pred_check_branch
      %27 = sbr.rel (0) target = $region29
    $region28: #{tpu_custom_call.1} parent=1 // pred_region
      _
    $region29: #{tpu_custom_call.1} parent=1 // pred_fallthru
      _
    // Predicated region
    $region30: #{tpu_custom_call.1} parent=1 // pred_check
      _
    $region31: #{tpu_custom_call.1} parent=1 // pred_check_branch
      %29 = sbr.rel (0) target = $region33
    $region32: #{tpu_custom_call.1} parent=1 // pred_region
      _
    $region33: #{tpu_custom_call.1} parent=1 // pred_fallthru
      _
    %v31 = vld [vmem:[%s0] sm:$0xf]
    %v32 = vld [vmem:[%s2] sm:$0xff]
    %v33 = vld [vmem:[%s2 + $0x8] sm:$0xff]
    %v34 = vld [vmem:[%s2 + $0x10] sm:$0xff]
    %v35 = vld [vmem:[%s2 + $0x18] sm:$0xff]
    %v40 = vunpack.c.l.b16 %v32
    %v41 = vunpack.c.h.b16 %v32
    %v42 = vunpack.c.l.b16 %v33
    %v43 = vunpack.c.h.b16 %v33
    %v44 = vunpack.c.l.b16 %v34
    %v45 = vunpack.c.h.b16 %v34
    %v46 = vunpack.c.l.b16 %v35
    %v47 = vunpack.c.h.b16 %v35
    %v48 = vpack.c.b16 %v42, %v40
    %v49 = vpack.c.b16 %v43, %v41
    %v50 = vpack.c.b16 %v46, %v44
    %v51 = vpack.c.b16 %v47, %v45
    %vm56 = vcmask 261120
    %v58 = vsel %vm56, %v31, 0
    %60 = vmatprep.subr.bf16.mxu0 %v49
    %61 = vmatpush1.bf16.msra.mxu0 %v48
    %62 = vmatprep.subr.bf16.mxu0 %v51
    %63 = vmatpush1.bf16.msra.mxu0 %v50
    %64 = vmatprep.subr.bf16.mxu0 0
    %65 = vmatpush1.bf16.msra.mxu0 0
    %66 = vmatprep.subr.bf16.mxu0 0
    %67 = vmatpush1.bf16.msra.mxu0 0
    %68 = vmatprep.subr.bf16.mxu0 0
    %69 = vmatpush1.bf16.msra.mxu0 0
    %70 = vmatprep.subr.bf16.mxu0 0
    %71 = vmatpush1.bf16.msra.mxu0 0
    %72 = vmatprep.subr.bf16.mxu0 0
    %73 = vmatpush1.bf16.msra.mxu0 0
    %74 = vmatprep.subr.bf16.mxu0 0
    %75 = vmatpush1.bf16.msra.mxu0 0
    %76 = vmatprep.subr.bf16.mxu0 0
    %77 = vmatpush1.bf16.msra.mxu0 0
    %78 = vmatprep.subr.bf16.mxu0 0
    %79 = vmatpush1.bf16.msra.mxu0 0
    %80 = vmatprep.subr.bf16.mxu0 0
    %81 = vmatpush1.bf16.msra.mxu0 0
    %82 = vmatprep.subr.bf16.mxu0 0
    %83 = vmatpush1.bf16.msra.mxu0 0
    %84 = vmatprep.subr.bf16.mxu0 0
    %85 = vmatpush1.bf16.msra.mxu0 0
    %86 = vmatprep.subr.bf16.mxu0 0
    %87 = vmatpush1.bf16.msra.mxu0 0
    %88 = vmatprep.subr.bf16.mxu0 0
    %89 = vmatpush1.bf16.msra.mxu0 0
    %90 = vmatprep.subr.bf16.mxu0 0
    %91 = vmatpush1.bf16.msra.mxu0 0
    %92 = vmatprep.mubr.bf16.mxu0 0
    %93 = vmatmul.mubr.bf16.gmra.mrb[0].mxu0 %v58
    %v94 = vpop.f32.mrb[0].mxu0
    %v95 = vadd.f32 0.0, %v94
    %v96 = vpop.f32.mrb[0].mxu0
    %v97 = vadd.f32 0.0, %v96
    %v98 = vpop.f32.mrb[0].mxu0
    %v99 = vpop.f32.mrb[0].mxu0
    %100 = vdwg.mxu0
    %v101 = vld [vmem:[%s1] sm:$0xf]
    %v102 = vld [vmem:[%s3] sm:$0xff]
    %v103 = vld [vmem:[%s3 + $0x8] sm:$0xff]
    %v104 = vld [vmem:[%s3 + $0x10] sm:$0xff]
    %v105 = vld [vmem:[%s3 + $0x18] sm:$0xff]
    %v106 = vld [vmem:[%s3 + $0x20] sm:$0xff]
    %v107 = vld [vmem:[%s3 + $0x28] sm:$0xff]
    %v108 = vld [vmem:[%s3 + $0x30] sm:$0xff]
    %v109 = vld [vmem:[%s3 + $0x38] sm:$0xff]
    %v118 = vunpack.c.l.b16 %v102
    %v119 = vunpack.c.h.b16 %v102
    %v120 = vunpack.c.l.b16 %v103
    %v121 = vunpack.c.h.b16 %v103
    %v122 = vunpack.c.l.b16 %v104
    %v123 = vunpack.c.h.b16 %v104
    %v124 = vunpack.c.l.b16 %v105
    %v125 = vunpack.c.h.b16 %v105
    %v126 = vunpack.c.l.b16 %v106
    %v127 = vunpack.c.h.b16 %v106
    %v128 = vunpack.c.l.b16 %v107
    %v129 = vunpack.c.h.b16 %v107
    %v130 = vunpack.c.l.b16 %v108
    %v131 = vunpack.c.h.b16 %v108
    %v132 = vunpack.c.l.b16 %v109
    %v133 = vunpack.c.h.b16 %v109
    %v134 = vpack.c.b16 %v122, %v118
    %v135 = vpack.c.b16 %v123, %v119
    %v136 = vpack.c.b16 %v124, %v120
    %v137 = vpack.c.b16 %v125, %v121
    %v138 = vpack.c.b16 %v130, %v126
    %v139 = vpack.c.b16 %v131, %v127
    %v140 = vpack.c.b16 %v132, %v128
    %v141 = vpack.c.b16 %v133, %v129
    %v151 = vsel %vm56, %v101, 0
    %153 = vmatprep.subr.bf16.mxu0 %v135
    %154 = vmatpush1.bf16.msra.mxu0 %v134
    %155 = vmatprep.subr.bf16.mxu0 %v139
    %156 = vmatpush1.bf16.msra.mxu0 %v138
    %157 = vmatprep.subr.bf16.mxu0 0
    %158 = vmatpush1.bf16.msra.mxu0 0
    %159 = vmatprep.subr.bf16.mxu0 0
    %160 = vmatpush1.bf16.msra.mxu0 0
    %161 = vmatprep.subr.bf16.mxu0 0
    %162 = vmatpush1.bf16.msra.mxu0 0
    %163 = vmatprep.subr.bf16.mxu0 0
    %164 = vmatpush1.bf16.msra.mxu0 0
    %165 = vmatprep.subr.bf16.mxu0 0
    %166 = vmatpush1.bf16.msra.mxu0 0
    %167 = vmatprep.subr.bf16.mxu0 0
    %168 = vmatpush1.bf16.msra.mxu0 0
    %169 = vmatprep.subr.bf16.mxu0 0
    %170 = vmatpush1.bf16.msra.mxu0 0
    %171 = vmatprep.subr.bf16.mxu0 0
    %172 = vmatpush1.bf16.msra.mxu0 0
    %173 = vmatprep.subr.bf16.mxu0 0
    %174 = vmatpush1.bf16.msra.mxu0 0
    %175 = vmatprep.subr.bf16.mxu0 0
    %176 = vmatpush1.bf16.msra.mxu0 0
    %177 = vmatprep.subr.bf16.mxu0 0
    %178 = vmatpush1.bf16.msra.mxu0 0
    %179 = vmatprep.subr.bf16.mxu0 0
    %180 = vmatpush1.bf16.msra.mxu0 0
    %181 = vmatprep.subr.bf16.mxu0 0
    %182 = vmatpush1.bf16.msra.mxu0 0
    %183 = vmatprep.subr.bf16.mxu0 0
    %184 = vmatpush1.bf16.msra.mxu0 0
    %185 = vmatprep.mubr.bf16.mxu0 0
    %186 = vmatmul.mubr.bf16.gmra.mrb[0].mxu0 %v151
    %v187 = vpop.f32.mrb[0].mxu0
    %v188 = vadd.f32 0.0, %v187
    %v189 = vpop.f32.mrb[0].mxu0
    %v190 = vadd.f32 0.0, %v189
    %v191 = vpop.f32.mrb[0].mxu0
    %v192 = vpop.f32.mrb[0].mxu0
    %193 = vdwg.mxu0
    %194 = vmatprep.subr.bf16.mxu0 %v137
    %195 = vmatpush1.bf16.msra.mxu0 %v136
    %196 = vmatprep.subr.bf16.mxu0 %v141
    %197 = vmatpush1.bf16.msra.mxu0 %v140
    %198 = vmatprep.subr.bf16.mxu0 0
    %199 = vmatpush1.bf16.msra.mxu0 0
    %200 = vmatprep.subr.bf16.mxu0 0
    %201 = vmatpush1.bf16.msra.mxu0 0
    %202 = vmatprep.subr.bf16.mxu0 0
    %203 = vmatpush1.bf16.msra.mxu0 0
    %204 = vmatprep.subr.bf16.mxu0 0
    %205 = vmatpush1.bf16.msra.mxu0 0
    %206 = vmatprep.subr.bf16.mxu0 0
    %207 = vmatpush1.bf16.msra.mxu0 0
    %208 = vmatprep.subr.bf16.mxu0 0
    %209 = vmatpush1.bf16.msra.mxu0 0
    %210 = vmatprep.subr.bf16.mxu0 0
    %211 = vmatpush1.bf16.msra.mxu0 0
    %212 = vmatprep.subr.bf16.mxu0 0
    %213 = vmatpush1.bf16.msra.mxu0 0
    %214 = vmatprep.subr.bf16.mxu0 0
    %215 = vmatpush1.bf16.msra.mxu0 0
    %216 = vmatprep.subr.bf16.mxu0 0
    %217 = vmatpush1.bf16.msra.mxu0 0
    %218 = vmatprep.subr.bf16.mxu0 0
    %219 = vmatpush1.bf16.msra.mxu0 0
    %220 = vmatprep.subr.bf16.mxu0 0
    %221 = vmatpush1.bf16.msra.mxu0 0
    %222 = vmatprep.subr.bf16.mxu0 0
    %223 = vmatpush1.bf16.msra.mxu0 0
    %224 = vmatprep.subr.bf16.mxu0 0
    %225 = vmatpush1.bf16.msra.mxu0 0
    %226 = vmatprep.mubr.bf16.mxu0 0
    %227 = vmatmul.mubr.bf16.gmra.mrb[0].mxu0 %v151
    %v228 = vpop.f32.mrb[0].mxu0
    %v229 = vadd.f32 0.0, %v228
    %v230 = vpop.f32.mrb[0].mxu0
    %v231 = vadd.f32 0.0, %v230
    %v232 = vpop.f32.mrb[0].mxu0
    %v233 = vpop.f32.mrb[0].mxu0
    %234 = vdwg.mxu0
    %235 = vmatprep.subr.mxu0 0.0
    %236 = vmatpush1.xpose.msra.mxu0 %v188
    %237 = vmatprep.subr.mxu0 0.0
    %238 = vmatpush1.xpose.msra.mxu0 0.0
    %239 = vmatprep.subr.mxu0 0.0
    %240 = vmatpush1.xpose.msra.mxu0 0.0
    %241 = vmatprep.subr.mxu0 0.0
    %242 = vmatpush1.xpose.msra.mxu0 0.0
    %243 = vmatprep.subr.mxu0 0.0
    %244 = vmatpush1.xpose.msra.mxu0 0.0
    %245 = vmatprep.subr.mxu0 0.0
    %246 = vmatpush1.xpose.msra.mxu0 0.0
    %247 = vmatprep.subr.mxu0 0.0
    %248 = vmatpush1.xpose.msra.mxu0 0.0
    %249 = vmatprep.subr.mxu0 0.0
    %250 = vmatpush1.xpose.msra.mxu0 0.0
    %251 = vmatprep.subr.mxu0 0.0
    %252 = vmatpush1.xpose.msra.mxu0 0.0
    %253 = vmatprep.subr.mxu0 0.0
    %254 = vmatpush1.xpose.msra.mxu0 0.0
    %255 = vmatprep.subr.mxu0 0.0
    %256 = vmatpush1.xpose.msra.mxu0 0.0
    %257 = vmatprep.subr.mxu0 0.0
    %258 = vmatpush1.xpose.msra.mxu0 0.0
    %259 = vmatprep.subr.mxu0 0.0
    %260 = vmatpush1.xpose.msra.mxu0 0.0
    %261 = vmatprep.subr.mxu0 0.0
    %262 = vmatpush1.xpose.msra.mxu0 0.0
    %263 = vmatprep.subr.mxu0 0.0
    %264 = vmatpush1.xpose.msra.mxu0 0.0
    %265 = vmatprep.subr.mxu0 0.0
    %266 = vmatpush1.xpose.msra.mxu0 0.0
    %267 = vmatprep.subr.mxu0 0.0
    %268 = vmatpush1.xpose.msra.mxu0 0.0
    %269 = vmatprep.subr.mxu0 0.0
    %270 = vmatpush1.xpose.msra.mxu0 0.0
    %271 = vmatprep.subr.mxu0 0.0
    %272 = vmatpush1.xpose.msra.mxu0 0.0
    %273 = vmatprep.subr.mxu0 0.0
    %274 = vmatpush1.xpose.msra.mxu0 0.0
    %275 = vmatprep.subr.mxu0 0.0
    %276 = vmatpush1.xpose.msra.mxu0 0.0
    %277 = vmatprep.subr.mxu0 0.0
    %278 = vmatpush1.xpose.msra.mxu0 0.0
    %279 = vmatprep.subr.mxu0 0.0
    %280 = vmatpush1.xpose.msra.mxu0 0.0
    %281 = vmatprep.subr.mxu0 0.0
    %282 = vmatpush1.xpose.msra.mxu0 0.0
    %283 = vmatprep.subr.mxu0 0.0
    %284 = vmatpush1.xpose.msra.mxu0 0.0
    %285 = vmatprep.subr.mxu0 0.0
    %286 = vmatpush1.xpose.msra.mxu0 0.0
    %287 = vmatprep.subr.mxu0 0.0
    %288 = vmatpush1.xpose.msra.mxu0 0.0
    %289 = vmatprep.subr.mxu0 0.0
    %290 = vmatpush1.xpose.msra.mxu0 0.0
    %291 = vmatprep.subr.mxu0 0.0
    %292 = vmatpush1.xpose.msra.mxu0 0.0
    %293 = vmatprep.subr.mxu0 0.0
    %294 = vmatpush1.xpose.msra.mxu0 0.0
    %295 = vmatprep.subr.mxu0 0.0
    %296 = vmatpush1.xpose.msra.mxu0 0.0
    %297 = vmatprep.subr.mxu0 0.0
    %298 = vmatpush1.xpose.msra.mxu0 0.0
    %299 = vmatprep.mubr.f32.mxu0 0.0
    %300 = vmatmul.mubr.f32.gmra.mrb[0].mxu0 %v95
    %v301 = vpop.f32.mrb[0].mxu0
    %v302 = vadd.f32 0.0, %v301
    %v303 = vpop.f32.mrb[0].mxu0
    %304 = vdwg.mxu0
    %vm305 = vcmask 64512
    %v306 = vsel %vm305, %v302, -inf
    %307 = vmax.xlane.f32.xlu0 %v306
    %v308 = vpop.xlane.xlu0 %307
    %v309 = vsub.f32 %v302, %v308
    %v310 = vmul.f32 %v309, 1.442695
    %v311 = vpow.pop %v310
    %v312 = vsel %vm305, %v311, 0.0
    %313 = vadd.xlane.f32.xlu0 %v312
    %v314 = vpop.xlane.xlu0 %313
    %v316 = vsel %vm305, %v311, 0
    %318 = vmatprep.subr.mxu0 0.0
    %319 = vmatpush1.msra.mxu0 %v229
    %320 = vmatprep.subr.mxu0 0.0
    %321 = vmatpush1.msra.mxu0 0.0
    %322 = vmatprep.subr.mxu0 0.0
    %323 = vmatpush1.msra.mxu0 0.0
    %324 = vmatprep.subr.mxu0 0.0
    %325 = vmatpush1.msra.mxu0 0.0
    %326 = vmatprep.subr.mxu0 0.0
    %327 = vmatpush1.msra.mxu0 0.0
    %328 = vmatprep.subr.mxu0 0.0
    %329 = vmatpush1.msra.mxu0 0.0
    %330 = vmatprep.subr.mxu0 0.0
    %331 = vmatpush1.msra.mxu0 0.0
    %332 = vmatprep.subr.mxu0 0.0
    %333 = vmatpush1.msra.mxu0 0.0
    %334 = vmatprep.subr.mxu0 0.0
    %335 = vmatpush1.msra.mxu0 0.0
    %336 = vmatprep.subr.mxu0 0.0
    %337 = vmatpush1.msra.mxu0 0.0
    %338 = vmatprep.subr.mxu0 0.0
    %339 = vmatpush1.msra.mxu0 0.0
    %340 = vmatprep.subr.mxu0 0.0
    %341 = vmatpush1.msra.mxu0 0.0
    %342 = vmatprep.subr.mxu0 0.0
    %343 = vmatpush1.msra.mxu0 0.0
    %344 = vmatprep.subr.mxu0 0.0
    %345 = vmatpush1.msra.mxu0 0.0
    %346 = vmatprep.subr.mxu0 0.0
    %347 = vmatpush1.msra.mxu0 0.0
    %348 = vmatprep.subr.mxu0 0.0
    %349 = vmatpush1.msra.mxu0 0.0
    %350 = vmatprep.subr.mxu0 0.0
    %351 = vmatpush1.msra.mxu0 0.0
    %352 = vmatprep.subr.mxu0 0.0
    %353 = vmatpush1.msra.mxu0 0.0
    %354 = vmatprep.subr.mxu0 0.0
    %355 = vmatpush1.msra.mxu0 0.0
    %356 = vmatprep.subr.mxu0 0.0
    %357 = vmatpush1.msra.mxu0 0.0
    %358 = vmatprep.subr.mxu0 0.0
    %359 = vmatpush1.msra.mxu0 0.0
    %360 = vmatprep.subr.mxu0 0.0
    %361 = vmatpush1.msra.mxu0 0.0
    %362 = vmatprep.subr.mxu0 0.0
    %363 = vmatpush1.msra.mxu0 0.0
    %364 = vmatprep.subr.mxu0 0.0
    %365 = vmatpush1.msra.mxu0 0.0
    %366 = vmatprep.subr.mxu0 0.0
    %367 = vmatpush1.msra.mxu0 0.0
    %368 = vmatprep.subr.mxu0 0.0
    %369 = vmatpush1.msra.mxu0 0.0
    %370 = vmatprep.subr.mxu0 0.0
    %371 = vmatpush1.msra.mxu0 0.0
    %372 = vmatprep.subr.mxu0 0.0
    %373 = vmatpush1.msra.mxu0 0.0
    %374 = vmatprep.subr.mxu0 0.0
    %375 = vmatpush1.msra.mxu0 0.0
    %376 = vmatprep.subr.mxu0 0.0
    %377 = vmatpush1.msra.mxu0 0.0
    %378 = vmatprep.subr.mxu0 0.0
    %379 = vmatpush1.msra.mxu0 0.0
    %380 = vmatprep.subr.mxu0 0.0
    %381 = vmatpush1.msra.mxu0 0.0
    %382 = vmatprep.mubr.f32.mxu0 0.0
    %383 = vmatmul.mubr.f32.gmra.mrb[0].mxu0 %v316
    %v384 = vpop.f32.mrb[0].mxu0
    %v385 = vadd.f32 0.0, %v384
    %v386 = vpop.f32.mrb[0].mxu0
    %387 = vdwg.mxu0
    %v388 = vrcp.pop %v314
    %v389 = vmul.f32 %v385, %v388
    %390 = vmatprep.subr.mxu0 0.0
    %391 = vmatpush1.xpose.msra.mxu0 %v190
    %392 = vmatprep.subr.mxu0 0.0
    %393 = vmatpush1.xpose.msra.mxu0 0.0
    %394 = vmatprep.subr.mxu0 0.0
    %395 = vmatpush1.xpose.msra.mxu0 0.0
    %396 = vmatprep.subr.mxu0 0.0
    %397 = vmatpush1.xpose.msra.mxu0 0.0
    %398 = vmatprep.subr.mxu0 0.0
    %399 = vmatpush1.xpose.msra.mxu0 0.0
    %400 = vmatprep.subr.mxu0 0.0
    %401 = vmatpush1.xpose.msra.mxu0 0.0
    %402 = vmatprep.subr.mxu0 0.0
    %403 = vmatpush1.xpose.msra.mxu0 0.0
    %404 = vmatprep.subr.mxu0 0.0
    %405 = vmatpush1.xpose.msra.mxu0 0.0
    %406 = vmatprep.subr.mxu0 0.0
    %407 = vmatpush1.xpose.msra.mxu0 0.0
    %408 = vmatprep.subr.mxu0 0.0
    %409 = vmatpush1.xpose.msra.mxu0 0.0
    %410 = vmatprep.subr.mxu0 0.0
    %411 = vmatpush1.xpose.msra.mxu0 0.0
    %412 = vmatprep.subr.mxu0 0.0
    %413 = vmatpush1.xpose.msra.mxu0 0.0
    %414 = vmatprep.subr.mxu0 0.0
    %415 = vmatpush1.xpose.msra.mxu0 0.0
    %416 = vmatprep.subr.mxu0 0.0
    %417 = vmatpush1.xpose.msra.mxu0 0.0
    %418 = vmatprep.subr.mxu0 0.0
    %419 = vmatpush1.xpose.msra.mxu0 0.0
    %420 = vmatprep.subr.mxu0 0.0
    %421 = vmatpush1.xpose.msra.mxu0 0.0
    %422 = vmatprep.subr.mxu0 0.0
    %423 = vmatpush1.xpose.msra.mxu0 0.0
    %424 = vmatprep.subr.mxu0 0.0
    %425 = vmatpush1.xpose.msra.mxu0 0.0
    %426 = vmatprep.subr.mxu0 0.0
    %427 = vmatpush1.xpose.msra.mxu0 0.0
    %428 = vmatprep.subr.mxu0 0.0
    %429 = vmatpush1.xpose.msra.mxu0 0.0
    %430 = vmatprep.subr.mxu0 0.0
    %431 = vmatpush1.xpose.msra.mxu0 0.0
    %432 = vmatprep.subr.mxu0 0.0
    %433 = vmatpush1.xpose.msra.mxu0 0.0
    %434 = vmatprep.subr.mxu0 0.0
    %435 = vmatpush1.xpose.msra.mxu0 0.0
    %436 = vmatprep.subr.mxu0 0.0
    %437 = vmatpush1.xpose.msra.mxu0 0.0
    %438 = vmatprep.subr.mxu0 0.0
    %439 = vmatpush1.xpose.msra.mxu0 0.0
    %440 = vmatprep.subr.mxu0 0.0
    %441 = vmatpush1.xpose.msra.mxu0 0.0
    %442 = vmatprep.subr.mxu0 0.0
    %443 = vmatpush1.xpose.msra.mxu0 0.0
    %444 = vmatprep.subr.mxu0 0.0
    %445 = vmatpush1.xpose.msra.mxu0 0.0
    %446 = vmatprep.subr.mxu0 0.0
    %447 = vmatpush1.xpose.msra.mxu0 0.0
    %448 = vmatprep.subr.mxu0 0.0
    %449 = vmatpush1.xpose.msra.mxu0 0.0
    %450 = vmatprep.subr.mxu0 0.0
    %451 = vmatpush1.xpose.msra.mxu0 0.0
    %452 = vmatprep.subr.mxu0 0.0
    %453 = vmatpush1.xpose.msra.mxu0 0.0
    %454 = vmatprep.mubr.f32.mxu0 0.0
    %455 = vmatmul.mubr.f32.gmra.mrb[0].mxu0 %v97
    %v456 = vpop.f32.mrb[0].mxu0
    %v457 = vadd.f32 0.0, %v456
    %v458 = vpop.f32.mrb[0].mxu0
    %459 = vdwg.mxu0
    %v460 = vsel %vm305, %v457, -inf
    %461 = vmax.xlane.f32.xlu0 %v460
    %v462 = vpop.xlane.xlu0 %461
    %v463 = vsub.f32 %v457, %v462
    %v464 = vmul.f32 %v463, 1.442695
    %v465 = vpow.pop %v464
    %v466 = vsel %vm305, %v465, 0.0
    %467 = vadd.xlane.f32.xlu0 %v466
    %v468 = vpop.xlane.xlu0 %467
    %v470 = vsel %vm305, %v465, 0
    %472 = vmatprep.subr.mxu0 0.0
    %473 = vmatpush1.msra.mxu0 %v231
    %474 = vmatprep.subr.mxu0 0.0
    %475 = vmatpush1.msra.mxu0 0.0
    %476 = vmatprep.subr.mxu0 0.0
    %477 = vmatpush1.msra.mxu0 0.0
    %478 = vmatprep.subr.mxu0 0.0
    %479 = vmatpush1.msra.mxu0 0.0
    %480 = vmatprep.subr.mxu0 0.0
    %481 = vmatpush1.msra.mxu0 0.0
    %482 = vmatprep.subr.mxu0 0.0
    %483 = vmatpush1.msra.mxu0 0.0
    %484 = vmatprep.subr.mxu0 0.0
    %485 = vmatpush1.msra.mxu0 0.0
    %486 = vmatprep.subr.mxu0 0.0
    %487 = vmatpush1.msra.mxu0 0.0
    %488 = vmatprep.subr.mxu0 0.0
    %489 = vmatpush1.msra.mxu0 0.0
    %490 = vmatprep.subr.mxu0 0.0
    %491 = vmatpush1.msra.mxu0 0.0
    %492 = vmatprep.subr.mxu0 0.0
    %493 = vmatpush1.msra.mxu0 0.0
    %494 = vmatprep.subr.mxu0 0.0
    %495 = vmatpush1.msra.mxu0 0.0
    %496 = vmatprep.subr.mxu0 0.0
    %497 = vmatpush1.msra.mxu0 0.0
    %498 = vmatprep.subr.mxu0 0.0
    %499 = vmatpush1.msra.mxu0 0.0
    %500 = vmatprep.subr.mxu0 0.0
    %501 = vmatpush1.msra.mxu0 0.0
    %502 = vmatprep.subr.mxu0 0.0
    %503 = vmatpush1.msra.mxu0 0.0
    %504 = vmatprep.subr.mxu0 0.0
    %505 = vmatpush1.msra.mxu0 0.0
    %506 = vmatprep.subr.mxu0 0.0
    %507 = vmatpush1.msra.mxu0 0.0
    %508 = vmatprep.subr.mxu0 0.0
    %509 = vmatpush1.msra.mxu0 0.0
    %510 = vmatprep.subr.mxu0 0.0
    %511 = vmatpush1.msra.mxu0 0.0
    %512 = vmatprep.subr.mxu0 0.0
    %513 = vmatpush1.msra.mxu0 0.0
    %514 = vmatprep.subr.mxu0 0.0
    %515 = vmatpush1.msra.mxu0 0.0
    %516 = vmatprep.subr.mxu0 0.0
    %517 = vmatpush1.msra.mxu0 0.0
    %518 = vmatprep.subr.mxu0 0.0
    %519 = vmatpush1.msra.mxu0 0.0
    %520 = vmatprep.subr.mxu0 0.0
    %521 = vmatpush1.msra.mxu0 0.0
    %522 = vmatprep.subr.mxu0 0.0
    %523 = vmatpush1.msra.mxu0 0.0
    %524 = vmatprep.subr.mxu0 0.0
    %525 = vmatpush1.msra.mxu0 0.0
    %526 = vmatprep.subr.mxu0 0.0
    %527 = vmatpush1.msra.mxu0 0.0
    %528 = vmatprep.subr.mxu0 0.0
    %529 = vmatpush1.msra.mxu0 0.0
    %530 = vmatprep.subr.mxu0 0.0
    %531 = vmatpush1.msra.mxu0 0.0
    %532 = vmatprep.subr.mxu0 0.0
    %533 = vmatpush1.msra.mxu0 0.0
    %534 = vmatprep.subr.mxu0 0.0
    %535 = vmatpush1.msra.mxu0 0.0
    %536 = vmatprep.mubr.f32.mxu0 0.0
    %537 = vmatmul.mubr.f32.gmra.mrb[0].mxu0 %v470
    %v538 = vpop.f32.mrb[0].mxu0
    %v539 = vadd.f32 0.0, %v538
    %v540 = vpop.f32.mrb[0].mxu0
    %541 = vdwg.mxu0
    %v542 = vrcp.pop %v468
    %v543 = vmul.f32 %v539, %v542
    %v544 = vpack.c.bf16 %v389, %v389
    %v545 = vpack.c.bf16 %v543, %v543
    %v546 = vld [vmem:[%s4] sm:$0xf]
    %v547 = vld [vmem:[%s4 + $0x4] sm:$0xf]
    %v548 = vld [vmem:[%s4 + $0x8] sm:$0xf]
    %v549 = vld [vmem:[%s4 + $0xc] sm:$0xf]
    %v550 = vld [vmem:[%s4 + $0x10] sm:$0xf]
    %v551 = vld [vmem:[%s4 + $0x14] sm:$0xf]
    %v552 = vld [vmem:[%s4 + $0x18] sm:$0xf]
    %v553 = vld [vmem:[%s4 + $0x1c] sm:$0xf]
    %v554 = vld [vmem:[%s4 + $0x20] sm:$0xf]
    %v555 = vld [vmem:[%s4 + $0x24] sm:$0xf]
    %v556 = vld [vmem:[%s4 + $0x28] sm:$0xf]
    %v557 = vld [vmem:[%s4 + $0x2c] sm:$0xf]
    %v558 = vld [vmem:[%s4 + $0x30] sm:$0xf]
    %v559 = vld [vmem:[%s4 + $0x34] sm:$0xf]
    %v560 = vld [vmem:[%s4 + $0x38] sm:$0xf]
    %v561 = vld [vmem:[%s4 + $0x3c] sm:$0xf]
    %v562 = vld [vmem:[%s4 + $0x40] sm:$0xf]
    %v563 = vld [vmem:[%s4 + $0x44] sm:$0xf]
    %v564 = vld [vmem:[%s4 + $0x48] sm:$0xf]
    %v565 = vld [vmem:[%s4 + $0x4c] sm:$0xf]
    %v566 = vld [vmem:[%s4 + $0x50] sm:$0xf]
    %v567 = vld [vmem:[%s4 + $0x54] sm:$0xf]
    %v568 = vld [vmem:[%s4 + $0x58] sm:$0xf]
    %v569 = vld [vmem:[%s4 + $0x5c] sm:$0xf]
    %v570 = vld [vmem:[%s4 + $0x60] sm:$0xf]
    %v571 = vld [vmem:[%s4 + $0x64] sm:$0xf]
    %v572 = vld [vmem:[%s4 + $0x68] sm:$0xf]
    %v573 = vld [vmem:[%s4 + $0x6c] sm:$0xf]
    %v574 = vld [vmem:[%s4 + $0x70] sm:$0xf]
    %v575 = vld [vmem:[%s4 + $0x74] sm:$0xf]
    %v576 = vld [vmem:[%s4 + $0x78] sm:$0xf]
    %v577 = vld [vmem:[%s4 + $0x7c] sm:$0xf]
    %v578 = vld [vmem:[%s5] sm:$0x1]
    %v580 = vlaneseq
    %v581 = vshrl.u32 %v580, 7
    %v582 = vsub.s32 0, %v581
    %v583 = vrot.slane %v578, %v582
    %v617 = vunpack.c.l.b16 %v546
    %v618 = vunpack.c.l.b16 %v547
    %v619 = vunpack.c.l.b16 %v548
    %v620 = vunpack.c.l.b16 %v549
    %v621 = vunpack.c.l.b16 %v550
    %v622 = vunpack.c.l.b16 %v551
    %v623 = vunpack.c.l.b16 %v552
    %v624 = vunpack.c.l.b16 %v553
    %v625 = vunpack.c.l.b16 %v554
    %v626 = vunpack.c.l.b16 %v555
    %v627 = vunpack.c.l.b16 %v556
    %v628 = vunpack.c.l.b16 %v557
    %v629 = vunpack.c.l.b16 %v558
    %v630 = vunpack.c.l.b16 %v559
    %v631 = vunpack.c.l.b16 %v560
    %v632 = vunpack.c.l.b16 %v561
    %v633 = vunpack.c.l.b16 %v562
    %v634 = vunpack.c.l.b16 %v563
    %v635 = vunpack.c.l.b16 %v564
    %v636 = vunpack.c.l.b16 %v565
    %v637 = vunpack.c.l.b16 %v566
    %v638 = vunpack.c.l.b16 %v567
    %v639 = vunpack.c.l.b16 %v568
    %v640 = vunpack.c.l.b16 %v569
    %v641 = vunpack.c.l.b16 %v570
    %v642 = vunpack.c.l.b16 %v571
    %v643 = vunpack.c.l.b16 %v572
    %v644 = vunpack.c.l.b16 %v573
    %v645 = vunpack.c.l.b16 %v574
    %v646 = vunpack.c.l.b16 %v575
    %v647 = vunpack.c.l.b16 %v576
    %v648 = vunpack.c.l.b16 %v577
    %v649 = vpack.c.b16 %v618, %v617
    %v650 = vpack.c.b16 %v620, %v619
    %v651 = vpack.c.b16 %v622, %v621
    %v652 = vpack.c.b16 %v624, %v623
    %v653 = vpack.c.b16 %v626, %v625
    %v654 = vpack.c.b16 %v628, %v627
    %v655 = vpack.c.b16 %v630, %v629
    %v656 = vpack.c.b16 %v632, %v631
    %v657 = vpack.c.b16 %v634, %v633
    %v658 = vpack.c.b16 %v636, %v635
    %v659 = vpack.c.b16 %v638, %v637
    %v660 = vpack.c.b16 %v640, %v639
    %v661 = vpack.c.b16 %v642, %v641
    %v662 = vpack.c.b16 %v644, %v643
    %v663 = vpack.c.b16 %v646, %v645
    %v664 = vpack.c.b16 %v648, %v647
    %681 = vmatprep.subr.bf16.mxu0 0
    %682 = vmatpush1.bf16.msra.mxu0 %v649
    %683 = vmatprep.subr.bf16.mxu0 0
    %684 = vmatpush1.bf16.msra.mxu0 %v650
    %685 = vmatprep.subr.bf16.mxu0 0
    %686 = vmatpush1.bf16.msra.mxu0 %v651
    %687 = vmatprep.subr.bf16.mxu0 0
    %688 = vmatpush1.bf16.msra.mxu0 %v652
    %689 = vmatprep.subr.bf16.mxu0 0
    %690 = vmatpush1.bf16.msra.mxu0 %v653
    %691 = vmatprep.subr.bf16.mxu0 0
    %692 = vmatpush1.bf16.msra.mxu0 %v654
    %693 = vmatprep.subr.bf16.mxu0 0
    %694 = vmatpush1.bf16.msra.mxu0 %v655
    %695 = vmatprep.subr.bf16.mxu0 0
    %696 = vmatpush1.bf16.msra.mxu0 %v656
    %697 = vmatprep.subr.bf16.mxu0 0
    %698 = vmatpush1.bf16.msra.mxu0 %v657
    %699 = vmatprep.subr.bf16.mxu0 0
    %700 = vmatpush1.bf16.msra.mxu0 %v658
    %701 = vmatprep.subr.bf16.mxu0 0
    %702 = vmatpush1.bf16.msra.mxu0 %v659
    %703 = vmatprep.subr.bf16.mxu0 0
    %704 = vmatpush1.bf16.msra.mxu0 %v660
    %705 = vmatprep.subr.bf16.mxu0 0
    %706 = vmatpush1.bf16.msra.mxu0 %v661
    %707 = vmatprep.subr.bf16.mxu0 0
    %708 = vmatpush1.bf16.msra.mxu0 %v662
    %709 = vmatprep.subr.bf16.mxu0 0
    %710 = vmatpush1.bf16.msra.mxu0 %v663
    %711 = vmatprep.subr.bf16.mxu0 0
    %712 = vmatpush1.bf16.msra.mxu0 %v664
    %713 = vmatprep.mubr.bf16.mxu0 %v545
    %714 = vmatmul.mubr.bf16.gmra.mrb[0].mxu0 %v544
    %v715 = vpop.f32.mrb[0].mxu0
    %v716 = vadd.f32 %v583, %v715
    %v717 = vpop.f32.mrb[0].mxu0
    %v718 = vpop.f32.mrb[0].mxu0
    %v719 = vpop.f32.mrb[0].mxu0
    %720 = vdwg.mxu0
    %v721 = vmax.f32 %v716, 0.0
    %v722 = vpack.c.bf16 %v721, %v721
    %v723 = vld [vmem:[%s6] sm:$0xff]
    %v724 = vld [vmem:[%s6 + $0x8] sm:$0xff]
    %v725 = vld [vmem:[%s6 + $0x10] sm:$0xff]
    %v726 = vld [vmem:[%s6 + $0x18] sm:$0xff]
    %v727 = vld [vmem:[%s6 + $0x20] sm:$0xff]
    %v728 = vld [vmem:[%s6 + $0x28] sm:$0xff]
    %v729 = vld [vmem:[%s6 + $0x30] sm:$0xff]
    %v730 = vld [vmem:[%s6 + $0x38] sm:$0xff]
    %v731 = vld [vmem:[%s7] sm:$0x3]
    %v733 = vlaneseq
    %v734 = vshrl.u32 %v733, 7
    %v735 = vsub.s32 0, %v734
    %v736 = vrot.slane %v731, %v735
    %v737 = vlaneseq
    %v738 = vshrl.u32 %v737, 7
    %v739 = vsub.s32 1, %v738
    %v740 = vrot.slane %v731, %v739
    %v751 = vunpack.c.l.b16 %v723
    %v752 = vunpack.c.h.b16 %v723
    %v753 = vunpack.c.l.b16 %v724
    %v754 = vunpack.c.h.b16 %v724
    %v755 = vunpack.c.l.b16 %v725
    %v756 = vunpack.c.h.b16 %v725
    %v757 = vunpack.c.l.b16 %v726
    %v758 = vunpack.c.h.b16 %v726
    %v759 = vunpack.c.l.b16 %v727
    %v760 = vunpack.c.h.b16 %v727
    %v761 = vunpack.c.l.b16 %v728
    %v762 = vunpack.c.h.b16 %v728
    %v763 = vunpack.c.l.b16 %v729
    %v764 = vunpack.c.h.b16 %v729
    %v765 = vunpack.c.l.b16 %v730
    %v766 = vunpack.c.h.b16 %v730
    %v767 = vpack.c.b16 %v753, %v751
    %v768 = vpack.c.b16 %v754, %v752
    %v769 = vpack.c.b16 %v757, %v755
    %v770 = vpack.c.b16 %v758, %v756
    %v771 = vpack.c.b16 %v761, %v759
    %v772 = vpack.c.b16 %v762, %v760
    %v773 = vpack.c.b16 %v765, %v763
    %v774 = vpack.c.b16 %v766, %v764
    %vm783 = vcmask 523264
    %v785 = vsel %vm783, %v722, 0
    %787 = vmatprep.subr.bf16.mxu0 %v768
    %788 = vmatpush1.bf16.msra.mxu0 %v767
    %789 = vmatprep.subr.bf16.mxu0 %v770
    %790 = vmatpush1.bf16.msra.mxu0 %v769
    %791 = vmatprep.subr.bf16.mxu0 %v772
    %792 = vmatpush1.bf16.msra.mxu0 %v771
    %793 = vmatprep.subr.bf16.mxu0 %v774
    %794 = vmatpush1.bf16.msra.mxu0 %v773
    %795 = vmatprep.subr.bf16.mxu0 0
    %796 = vmatpush1.bf16.msra.mxu0 0
    %797 = vmatprep.subr.bf16.mxu0 0
    %798 = vmatpush1.bf16.msra.mxu0 0
    %799 = vmatprep.subr.bf16.mxu0 0
    %800 = vmatpush1.bf16.msra.mxu0 0
    %801 = vmatprep.subr.bf16.mxu0 0
    %802 = vmatpush1.bf16.msra.mxu0 0
    %803 = vmatprep.subr.bf16.mxu0 0
    %804 = vmatpush1.bf16.msra.mxu0 0
    %805 = vmatprep.subr.bf16.mxu0 0
    %806 = vmatpush1.bf16.msra.mxu0 0
    %807 = vmatprep.subr.bf16.mxu0 0
    %808 = vmatpush1.bf16.msra.mxu0 0
    %809 = vmatprep.subr.bf16.mxu0 0
    %810 = vmatpush1.bf16.msra.mxu0 0
    %811 = vmatprep.subr.bf16.mxu0 0
    %812 = vmatpush1.bf16.msra.mxu0 0
    %813 = vmatprep.subr.bf16.mxu0 0
    %814 = vmatpush1.bf16.msra.mxu0 0
    %815 = vmatprep.subr.bf16.mxu0 0
    %816 = vmatpush1.bf16.msra.mxu0 0
    %817 = vmatprep.subr.bf16.mxu0 0
    %818 = vmatpush1.bf16.msra.mxu0 0
    %819 = vmatprep.mubr.bf16.mxu0 0
    %820 = vmatmul.mubr.bf16.gmra.mrb[0].mxu0 %v785
    %v821 = vpop.f32.mrb[0].mxu0
    %v822 = vadd.f32 %v736, %v821
    %v823 = vpop.f32.mrb[0].mxu0
    %v824 = vadd.f32 %v740, %v823
    %v825 = vpop.f32.mrb[0].mxu0
    %v826 = vpop.f32.mrb[0].mxu0
    %827 = vdwg.mxu0
    %828 = vst [vmem:[#allocation2] sm:$0xff] %v822
    %s829 = scalar_lea.vmem [#allocation2], 8
    %830 = vst [vmem:[%s829] sm:$0xff] %v824
    // Predicated region
    $region34: #{tpu_custom_call.1} parent=1 // pred_check
      _
    $region35: #{tpu_custom_call.1} parent=1 // pred_check_branch
      %832 = sbr.rel (0) target = $region37
    $region36: #{tpu_custom_call.1} parent=1 // pred_region
      %s834 = ssub.s32 256, 256
      %835 = vsyncadd [#allocation3], %s834
      %s836 = sshll.u32 [#allocation2], 4
      %s837 = int_to_ptr.vmem [resolvable:$true] %s836
      %842 = dma.vmem_to_hbm [thread:$0]  %s837, 256, %s8, [#allocation3], 128, 128, 8
    $region37: #{tpu_custom_call.1} parent=1 // pred_fallthru
      _
    // Predicated region
    $region38: #{tpu_custom_call.1} parent=1 // pred_check
      _
    $region39: #{tpu_custom_call.1} parent=1 // pred_check_branch
      %844 = sbr.rel (0) target = $region41
    $region40: #{tpu_custom_call.1} parent=1 // pred_region
      %845 = dma.done [#allocation3], 256
    $region41: #{tpu_custom_call.1} parent=1 // pred_fallthru
      _
    %846 = vsyncpa [#allocation3], 1

</llo_original>
